<compile_context>
chip_gen: v6e
topology: v6e:2x2x1
jax: 0.10.0
libtpu: 0.0.40
codegen_flags: <defaults>
</compile_context>

<pallas_src>
import jax
import jax.numpy as jnp
import numpy as np
from jax.experimental import pallas as pl
from jax.experimental.pallas import tpu as pltpu


def _round_up(x, m):
    return ((x + m - 1) // m) * m


# --------------------------- fused path (small / medium N) -------------------
# grid = (hop,). A_k resident in VMEM:  acc += rdeq_k * (A_k @ relu(s_k*rdeq_k*(A_k @ XW1)))
# finalize: Z = acc @ W2.
def _fused_kernel(a_ref, xw1_ref, w2_ref, sr_ref, r_ref, out_ref, acc_ref):
    k = pl.program_id(0)

    @pl.when(k == 0)
    def _():
        acc_ref[...] = jnp.zeros_like(acc_ref)

    a_bf = a_ref[...].astype(jnp.bfloat16)                     # int8 -> bf16 dequant (VPU)
    h1 = jnp.dot(a_bf, xw1_ref[...], preferred_element_type=jnp.float32)
    h1 = jnp.maximum(h1 * sr_ref[...], 0.0).astype(jnp.bfloat16)   # s_k * row-scale, relu
    acc_ref[...] += r_ref[...] * jnp.dot(a_bf, h1, preferred_element_type=jnp.float32)

    @pl.when(k == pl.num_programs(0) - 1)
    def _():
        out_ref[...] = jnp.dot(acc_ref[...].astype(jnp.bfloat16), w2_ref[...],
                               preferred_element_type=jnp.float32)


# --------------------------- two-pass tiled path (large N) -------------------
# pass 1:  H1[k] = relu(s_k * rdeq_k * (A_k @ XW1)), tiled over (hop, row tile i, contraction j).
def _h1_kernel(a_ref, xw1_ref, sr_ref, h1_ref, acc_ref):
    j = pl.program_id(2)

    @pl.when(j == 0)
    def _():
        acc_ref[...] = jnp.zeros_like(acc_ref)

    acc_ref[...] += jnp.dot(a_ref[...].astype(jnp.bfloat16), xw1_ref[...],
                            preferred_element_type=jnp.float32)

    @pl.when(j == pl.num_programs(2) - 1)
    def _():
        h1_ref[...] = jnp.maximum(acc_ref[...] * sr_ref[...], 0.0).astype(h1_ref.dtype)


# pass 2:  Z_rows[i] = (sum_k sum_j rdeq_k * (A_k[i,j] @ H1_k[j])) @ W2.
def _z_kernel(a_ref, h1_ref, w2_ref, r_ref, out_ref, acc_ref):
    k = pl.program_id(1)
    j = pl.program_id(2)

    @pl.when((k == 0) & (j == 0))
    def _():
        acc_ref[...] = jnp.zeros_like(acc_ref)

    acc_ref[...] += r_ref[...] * jnp.dot(a_ref[...].astype(jnp.bfloat16), h1_ref[...],
                                         preferred_element_type=jnp.float32)

    @pl.when((k == pl.num_programs(1) - 1) & (j == pl.num_programs(2) - 1))
    def _():
        out_ref[...] = jnp.dot(acc_ref[...].astype(jnp.bfloat16), w2_ref[...],
                               preferred_element_type=jnp.float32)


def _fused_vmem_bytes(Np, Hp, Cp):
    a_dbuf = 2 * Np * Np                  # int8 A, double-buffered
    a_deq = Np * Np * 2                   # in-kernel bf16 dequantized copy
    xw1 = 2 * Np * Hp * 2
    w2 = 2 * Hp * Cp * 2
    scl = 2 * 2 * Np * 4                  # per-row scale vectors
    out = 2 * Np * Cp * 4
    acc = Np * Hp * 4
    tmp = Np * Hp * (4 + 4 + 2)           # pre-relu f32, scaled f32, bf16 H1
    return a_dbuf + a_deq + xw1 + w2 + scl + out + acc + tmp


def lwpcgr_forward(adjs, feats, w1, w2, hlw, *, force_two_pass=False, tile=None):
    """adjs: (hop, N, N) normalized dense adjacencies; feats: (N, F);
    w1: (F, H); w2: (H, C); hlw: (hop,). Returns (N, C) float32."""
    hop, N, _ = adjs.shape
    H = w1.shape[1]
    C = w2.shape[1]

    adjs = adjs.astype(jnp.float32)
    feats = feats.astype(jnp.float32)
    w1 = w1.astype(jnp.float32)
    w2 = w2.astype(jnp.float32)
    hlw = hlw.astype(jnp.float32)

    # per-hop feature scales: hlw[0], hlw[1]/2, hlw[2]/3, ...
    scales = hlw / jnp.arange(1.0, hop + 1.0, dtype=jnp.float32)

    # lane-dense paddings for the hidden and class dims
    Hp = max(128, _round_up(H, 128))
    Cp = max(128, _round_up(C, 128))

    # path selection + row/col padding of N
    Np_fused = max(128, _round_up(N, 128))
    fused_ok = (not force_two_pass) and _fused_vmem_bytes(Np_fused, Hp, Cp) <= 28 * (1 << 20)
    if fused_ok:
        Np = Np_fused
        tm = tn = Np
    else:
        if tile is None:
            tile = 1024 if _round_up(N, 1024) <= int(1.15 * N) else 512
        tm = tn = tile
        Np = _round_up(N, tile)

    # ---- int8 per-row quantization of A (halves the dominant HBM stream) ----
    rowmax = jnp.maximum(jnp.max(jnp.abs(adjs), axis=2), 1e-30)              # (hop, N)
    q = jnp.clip(jnp.round(adjs * (127.0 / rowmax)[:, :, None]), -127.0, 127.0)
    adj_q = jnp.zeros((hop, Np, Np), jnp.int8).at[:, :N, :N].set(q.astype(jnp.int8))
    rdeq = jnp.zeros((hop, Np, 1), jnp.float32).at[:, :N, 0].set(rowmax / 127.0)
    srdeq = scales[:, None, None] * rdeq                                     # s_k * row-dequant

    # ---- hop-invariant matmul hoisted: (s*X) @ W1 == s * (X @ W1) ----
    xw1_full = jnp.dot(feats, w1, preferred_element_type=jnp.float32)
    xw1 = jnp.zeros((Np, Hp), jnp.bfloat16).at[:N, :H].set(xw1_full.astype(jnp.bfloat16))

    # W2 padded, resident in bf16
    w2p = jnp.zeros((Hp, Cp), jnp.bfloat16).at[:H, :C].set(w2.astype(jnp.bfloat16))

    if fused_ok:
        vmem_limit = int(min(48 * (1 << 20),
                             max(16 * (1 << 20), _fused_vmem_bytes(Np, Hp, Cp) + 8 * (1 << 20))))
        z = pl.pallas_call(
            _fused_kernel,
            out_shape=jax.ShapeDtypeStruct((Np, Cp), jnp.float32),
            grid=(hop,),
            in_specs=[
                pl.BlockSpec((None, Np, Np), lambda k: (k, 0, 0)),   # A_k (int8)
                pl.BlockSpec((Np, Hp), lambda k: (0, 0)),            # XW1 (bf16)
                pl.BlockSpec((Hp, Cp), lambda k: (0, 0)),            # W2 (bf16)
                pl.BlockSpec((None, Np, 1), lambda k: (k, 0, 0)),    # s_k * row-dequant
                pl.BlockSpec((None, Np, 1), lambda k: (k, 0, 0)),    # row-dequant
            ],
            out_specs=pl.BlockSpec((Np, Cp), lambda k: (0, 0)),
            scratch_shapes=[pltpu.VMEM((Np, Hp), jnp.float32)],
            compiler_params=pltpu.CompilerParams(
                dimension_semantics=("arbitrary",),
                vmem_limit_bytes=vmem_limit),
        )(adj_q, xw1, w2p, srdeq, rdeq)
        return z[:N, :C]

    # ---------------- two-pass tiled path (large graphs) ----------------
    ni, nj = Np // tm, Np // tn
    p1_bytes = 2 * tm * tn + tm * tn * 2 + 2 * tn * Hp * 2 + 2 * tm * Hp * 2 + tm * Hp * 4 + 2 * tm * 4
    p2_bytes = (2 * tm * tn + tm * tn * 2 + 2 * tn * Hp * 2 + 2 * Hp * Cp * 2
                + 2 * tm * Cp * 4 + tm * Hp * 4 + 2 * tm * 4)
    vmem_limit = int(min(48 * (1 << 20),
                         max(16 * (1 << 20), int(1.5 * max(p1_bytes, p2_bytes)) + 4 * (1 << 20))))

    # pass 1: H1 (hop, Np, Hp) in bf16
    h1 = pl.pallas_call(
        _h1_kernel,
        out_shape=jax.ShapeDtypeStruct((hop, Np, Hp), jnp.bfloat16),
        grid=(hop, ni, nj),
        in_specs=[
            pl.BlockSpec((None, tm, tn), lambda k, i, j: (k, i, j)),   # A_k tile (int8)
            pl.BlockSpec((tn, Hp), lambda k, i, j: (j, 0)),            # XW1 tile (bf16)
            pl.BlockSpec((None, tm, 1), lambda k, i, j: (k, i, 0)),    # s_k * row-dequant
        ],
        out_specs=pl.BlockSpec((None, tm, Hp), lambda k, i, j: (k, i, 0)),
        scratch_shapes=[pltpu.VMEM((tm, Hp), jnp.float32)],
        compiler_params=pltpu.CompilerParams(
            dimension_semantics=("parallel", "parallel", "arbitrary"),
            vmem_limit_bytes=vmem_limit),
    )(adj_q, xw1, srdeq)

    # pass 2: Z = (sum_k rdeq_k * (A_k @ H1_k)) @ W2, lane-padded output
    # TODO(synk): on v7x with ni==1 one could emit per-hop partials (hop axis "parallel")
    # and sum in the wrapper to feed the second TensorCore; not chip-gated here.
    z = pl.pallas_call(
        _z_kernel,
        out_shape=jax.ShapeDtypeStruct((Np, Cp), jnp.float32),
        grid=(ni, hop, nj),
        in_specs=[
            pl.BlockSpec((None, tm, tn), lambda i, k, j: (k, i, j)),   # A_k tile (int8)
            pl.BlockSpec((None, tn, Hp), lambda i, k, j: (k, j, 0)),   # H1_k tile (bf16)
            pl.BlockSpec((Hp, Cp), lambda i, k, j: (0, 0)),            # W2 (bf16, resident)
            pl.BlockSpec((None, tm, 1), lambda i, k, j: (k, i, 0)),    # row-dequant
        ],
        out_specs=pl.BlockSpec((tm, Cp), lambda i, k, j: (i, 0)),
        scratch_shapes=[pltpu.VMEM((tm, Hp), jnp.float32)],
        compiler_params=pltpu.CompilerParams(
            dimension_semantics=("parallel", "arbitrary", "arbitrary"),
            vmem_limit_bytes=vmem_limit),
    )(adj_q, h1, w2p, rdeq)

    return z[:N, :C]


def _reference(adjs, feats, w1, w2, hlw):
    hop = adjs.shape[0]
    scales = hlw / jnp.arange(1.0, hop + 1.0, dtype=jnp.float32)
    z = 0.0
    for k in range(hop):
        h0 = scales[k] * feats
        h1 = jax.nn.relu(adjs[k] @ (h0 @ w1))
        z = z + adjs[k] @ (h1 @ w2)
    return z


def _make_norm_adj(key, n):
    """Random symmetric adjacency with self-loops, D^{-1/2} A D^{-1/2} normalized."""
    a = (jax.random.uniform(key, (n, n)) > 0.7).astype(jnp.float32)
    a = jnp.maximum(a, a.T)
    a = a + jnp.eye(n, dtype=jnp.float32)
    deg = jnp.sum(a, axis=1)
    dinv = 1.0 / jnp.sqrt(deg)
    return dinv[:, None] * a * dinv[None, :]


if __name__ == "__main__":
    # small shapes: N nodes, F input_dim, H hidden_dim, C out_dim, `hop` graphs
    N, F_, H, C, HOP = 16, 8, 32, 4, 3

    key = jax.random.PRNGKey(0)
    k_adj, k_x, k_w1, k_w2, k_hlw = jax.random.split(key, 5)

    adj_keys = jax.random.split(k_adj, HOP)
    adjs = jnp.stack([_make_norm_adj(adj_keys[i], N) for i in range(HOP)])  # (hop, N, N)
    feats = jax.random.normal(k_x, (N, F_), dtype=jnp.float32)              # (N, F)

    # deterministic synthetic parameters (GraphConv weights, bias=False; hlw ~ normal init)
    w1 = jax.random.normal(k_w1, (F_, H), dtype=jnp.float32) * (1.0 / np.sqrt(F_))
    w2 = jax.random.normal(k_w2, (H, C), dtype=jnp.float32) * (1.0 / np.sqrt(H))
    hlw = jax.random.normal(k_hlw, (HOP,), dtype=jnp.float32)
    # TODO(synk): self.hlw_lin (nn.Linear(1, num_prop)) is unused in the PyTorch forward; omitted.

    ref = _reference(adjs, feats, w1, w2, hlw)

    # default path (fused, small graph)
    out = jax.block_until_ready(lwpcgr_forward(adjs, feats, w1, w2, hlw))
    # tolerance vs f32 reference: A streamed as per-row int8, XW1/H1/W2 streamed as bf16
    np.testing.assert_allclose(np.asarray(out), np.asarray(ref), rtol=3e-2, atol=3e-2)

    # also exercise the tiled two-pass path (used for large graphs) at a small tile
    out2 = jax.block_until_ready(
        lwpcgr_forward(adjs, feats, w1, w2, hlw, force_two_pass=True, tile=128))
    np.testing.assert_allclose(np.asarray(out2), np.asarray(ref), rtol=3e-2, atol=3e-2)

    print("KERNEL_OK")
</pallas_src>

<mosaic_0001>
module attributes {stable_mosaic.version = 11 : i64} {
  func.func @_fused_kernel(%arg0: i32, %arg1: memref<1x128x128xi8, #tpu.memory_space<vmem>>, %arg2: memref<128x128xbf16, #tpu.memory_space<vmem>>, %arg3: memref<128x128xbf16, #tpu.memory_space<vmem>>, %arg4: memref<1x128x1xf32, #tpu.memory_space<vmem>>, %arg5: memref<1x128x1xf32, #tpu.memory_space<vmem>>, %arg6: memref<128x128xf32, #tpu.memory_space<vmem>>, %arg7: memref<128x128xf32, #tpu.memory_space<vmem>>) attributes {dimension_semantics = [#tpu.dimension_semantics<arbitrary>], iteration_bounds = array<i64: 3>, scalar_prefetch = 0 : i64, scratch_operands = 1 : i64, tpu.core_type = #tpu.core_type<tc>, window_params = [{transform_indices = @transform_0, window_bounds = array<i64: 1, 128, 128>}, {pipeline_mode = #tpu.pipeline_mode<synchronous>, transform_indices = @transform_1, window_bounds = array<i64: 128, 128>}, {pipeline_mode = #tpu.pipeline_mode<synchronous>, transform_indices = @transform_2, window_bounds = array<i64: 128, 128>}, {transform_indices = @transform_3, window_bounds = array<i64: 1, 128, 1>}, {transform_indices = @transform_4, window_bounds = array<i64: 1, 128, 1>}, {pipeline_mode = #tpu.pipeline_mode<synchronous>, transform_indices = @transform_5, window_bounds = array<i64: 128, 128>}]} {
    %c0_i32 = arith.constant 0 : i32
    %0 = arith.cmpi eq, %arg0, %c0_i32 : i32
    %1 = arith.extui %0 : i1 to i32
    %c0_i32_0 = arith.constant 0 : i32
    %2 = arith.cmpi ne, %1, %c0_i32_0 : i32
    scf.if %2 {
      %cst_18 = arith.constant 0.000000e+00 : f32
      %26 = vector.broadcast %cst_18 : f32 to vector<128x128xf32>
      %c0_19 = arith.constant 0 : index
      %c0_20 = arith.constant 0 : index
      %27 = vector.load %arg7[%c0_19, %c0_20] : memref<128x128xf32, #tpu.memory_space<vmem>>, vector<128x128xf32>
      tpu.vector_store %arg7[%c0_19, %c0_20], %26 {strides = array<i32>} : memref<128x128xf32, #tpu.memory_space<vmem>>, vector<128x128xf32>,
    } else {
    }
    %c0 = arith.constant 0 : index
    %c0_1 = arith.constant 0 : index
    %c0_2 = arith.constant 0 : index
    %3 = vector.load %arg1[%c0, %c0_1, %c0_2] : memref<1x128x128xi8, #tpu.memory_space<vmem>>, vector<1x128x128xi8>
    %4 = vector.shape_cast %3 : vector<1x128x128xi8> to vector<128x128xi8>
    %5 = arith.sitofp %4 : vector<128x128xi8> to vector<128x128xbf16>
    %c0_3 = arith.constant 0 : index
    %c0_4 = arith.constant 0 : index
    %6 = vector.load %arg2[%c0_3, %c0_4] : memref<128x128xbf16, #tpu.memory_space<vmem>>, vector<128x128xbf16>
    %cst = arith.constant dense<0.000000e+00> : vector<128x128xf32>
    %7 = tpu.matmul %5, %6, %cst {dimension_numbers = #tpu.dot_dimension_numbers<[1], [0], [0], [1], [0, 0, 1, 1], [], []>} : vector<128x128xbf16>, vector<128x128xbf16>, vector<128x128xf32> -> vector<128x128xf32>
    %c0_5 = arith.constant 0 : index
    %c0_6 = arith.constant 0 : index
    %c0_7 = arith.constant 0 : index
    %8 = vector.load %arg4[%c0_5, %c0_6, %c0_7] : memref<1x128x1xf32, #tpu.memory_space<vmem>>, vector<1x128x1xf32>
    %9 = vector.shape_cast %8 : vector<1x128x1xf32> to vector<128x1xf32>
    %10 = vector.broadcast %9 : vector<128x1xf32> to vector<128x128xf32>
    %11 = arith.mulf %7, %10 : vector<128x128xf32>
    %cst_8 = arith.constant 0.000000e+00 : f32
    %12 = vector.broadcast %cst_8 : f32 to vector<128x128xf32>
    %13 = arith.maximumf %11, %12 : vector<128x128xf32>
    %14 = arith.truncf %13 : vector<128x128xf32> to vector<128x128xbf16>
    %c0_9 = arith.constant 0 : index
    %c0_10 = arith.constant 0 : index
    %15 = vector.load %arg7[%c0_9, %c0_10] : memref<128x128xf32, #tpu.memory_space<vmem>>, vector<128x128xf32>
    %c0_11 = arith.constant 0 : index
    %c0_12 = arith.constant 0 : index
    %c0_13 = arith.constant 0 : index
    %16 = vector.load %arg5[%c0_11, %c0_12, %c0_13] : memref<1x128x1xf32, #tpu.memory_space<vmem>>, vector<1x128x1xf32>
    %17 = vector.shape_cast %16 : vector<1x128x1xf32> to vector<128x1xf32>
    %cst_14 = arith.constant dense<0.000000e+00> : vector<128x128xf32>
    %18 = tpu.matmul %5, %14, %cst_14 {dimension_numbers = #tpu.dot_dimension_numbers<[1], [0], [0], [1], [0, 0, 1, 1], [], []>} : vector<128x128xbf16>, vector<128x128xbf16>, vector<128x128xf32> -> vector<128x128xf32>
    %19 = vector.broadcast %17 : vector<128x1xf32> to vector<128x128xf32>
    %20 = arith.mulf %19, %18 : vector<128x128xf32>
    %21 = arith.addf %15, %20 : vector<128x128xf32>
    %c0_15 = arith.constant 0 : index
    %c0_16 = arith.constant 0 : index
    %22 = vector.load %arg7[%c0_15, %c0_16] : memref<128x128xf32, #tpu.memory_space<vmem>>, vector<128x128xf32>
    tpu.vector_store %arg7[%c0_15, %c0_16], %21 {strides = array<i32>} : memref<128x128xf32, #tpu.memory_space<vmem>>, vector<128x128xf32>,
    %c2_i32 = arith.constant 2 : i32
    %23 = arith.cmpi eq, %arg0, %c2_i32 : i32
    %24 = arith.extui %23 : i1 to i32
    %c0_i32_17 = arith.constant 0 : i32
    %25 = arith.cmpi ne, %24, %c0_i32_17 : i32
    scf.if %25 {
      %c0_18 = arith.constant 0 : index
      %c0_19 = arith.constant 0 : index
      %26 = vector.load %arg7[%c0_18, %c0_19] : memref<128x128xf32, #tpu.memory_space<vmem>>, vector<128x128xf32>
      %27 = arith.truncf %26 : vector<128x128xf32> to vector<128x128xbf16>
      %c0_20 = arith.constant 0 : index
      %c0_21 = arith.constant 0 : index
      %28 = vector.load %arg3[%c0_20, %c0_21] : memref<128x128xbf16, #tpu.memory_space<vmem>>, vector<128x128xbf16>
      %cst_22 = arith.constant dense<0.000000e+00> : vector<128x128xf32>
      %29 = tpu.matmul %27, %28, %cst_22 {dimension_numbers = #tpu.dot_dimension_numbers<[1], [0], [0], [1], [0, 0, 1, 1], [], []>} : vector<128x128xbf16>, vector<128x128xbf16>, vector<128x128xf32> -> vector<128x128xf32>
      %c0_23 = arith.constant 0 : index
      %c0_24 = arith.constant 0 : index
      %30 = vector.load %arg6[%c0_23, %c0_24] : memref<128x128xf32, #tpu.memory_space<vmem>>, vector<128x128xf32>
      tpu.vector_store %arg6[%c0_23, %c0_24], %29 {strides = array<i32>} : memref<128x128xf32, #tpu.memory_space<vmem>>, vector<128x128xf32>,
    } else {
    }
    return
  }
  func.func @transform_0(%arg0: i32) -> (i32, i32, i32) {
    %c0_i32 = arith.constant 0 : i32
    %c0_i32_0 = arith.constant 0 : i32
    %c0_i32_1 = arith.constant 0 : i32
    return %arg0, %c0_i32, %c0_i32_0 : i32, i32, i32
  }
  func.func @transform_1(%arg0: i32) -> (i32, i32) {
    %c0_i32 = arith.constant 0 : i32
    %c0_i32_0 = arith.constant 0 : i32
    %c0_i32_1 = arith.constant 0 : i32
    return %c0_i32, %c0_i32_0 : i32, i32
  }
  func.func @transform_2(%arg0: i32) -> (i32, i32) {
    %c0_i32 = arith.constant 0 : i32
    %c0_i32_0 = arith.constant 0 : i32
    %c0_i32_1 = arith.constant 0 : i32
    return %c0_i32, %c0_i32_0 : i32, i32
  }
  func.func @transform_3(%arg0: i32) -> (i32, i32, i32) {
    %c0_i32 = arith.constant 0 : i32
    %c0_i32_0 = arith.constant 0 : i32
    %c0_i32_1 = arith.constant 0 : i32
    return %arg0, %c0_i32, %c0_i32_0 : i32, i32, i32
  }
  func.func @transform_4(%arg0: i32) -> (i32, i32, i32) {
    %c0_i32 = arith.constant 0 : i32
    %c0_i32_0 = arith.constant 0 : i32
    %c0_i32_1 = arith.constant 0 : i32
    return %arg0, %c0_i32, %c0_i32_0 : i32, i32, i32
  }
  func.func @transform_5(%arg0: i32) -> (i32, i32) {
    %c0_i32 = arith.constant 0 : i32
    %c0_i32_0 = arith.constant 0 : i32
    %c0_i32_1 = arith.constant 0 : i32
    return %c0_i32, %c0_i32_0 : i32, i32
  }
}

</mosaic_0001>

<llo_original>
// kernel: tpu_custom_call.1
$region0: #{tpu_custom_call.1}
  #allocation0 [shape = 'u32[]', space=smem, size = 0x4, offset = 0x4, fixed_abs, tag = 'smem constant byte address 0x4 - core index']
  #allocation1 [shape = 'u32[144,128]{1,0:T(1,128)}', space=vmem, size = 0x12000, scoped, tag = 'internal scratch']
  #allocation2 [shape = 'f32[128,128]{1,0:T(8,128)}', space=vmem, size = 0x10000, scoped, tag = 'scratch operand']
  %s0 = inlined_call_operand.vmem [shape: s8[3,128,128], index: 0, kind: input, shape index: {}]
  %s1 = inlined_call_operand.vmem [shape: bf16[128,128], index: 1, kind: input, shape index: {}]
  %s2 = inlined_call_operand.vmem [shape: bf16[128,128], index: 2, kind: input, shape index: {}]
  %s3 = inlined_call_operand.vmem [shape: f32[3,128,1], index: 3, kind: input, shape index: {}]
  %s4 = inlined_call_operand.vmem [shape: f32[3,128,1], index: 4, kind: input, shape index: {}]
  %s5 = inlined_call_operand.hbm [shape: f32[128,128], index: 5, kind: output, shape index: {}]
  %s6 = sld [smem:[#allocation0]]
  $region61: #{tpu_custom_call.1} parent=0
    _
  %s8 = ssub.s32 1, %s6
  %s9 = scalar_select 0, %s8, %s6
  $region1: #{tpu_custom_call.1} parent=0
    #allocation3 [shape = 'u8[65536]{0}', space=vmem, size = 0x10000, scoped, tag = 'output window, operand 0, single buffered']
    #allocation4 [shape = 's32[2]{0}', space=sflag, size = 0x8, scoped, tag = 'scoped memory for tpu_custom_call.1']
    %10 = vsyncpa [#allocation4], 0
    loop: start=0, step=1, limit=5
    $region2: #{tpu_custom_call.1} parent=1 // loop_pre_header
      _
    $region3: #{tpu_custom_call.1} parent=1 // loop_header
      %s12 = sphi 0, %s16
      %p13 = scmp.ge.s32.totalorder %s12, 5
      %s22 = sphi 0, %s24
      %s25 = sphi 0, %s22
      %s26 = sphi 0, %s25
      %s42 = sphi 0, %s26
      %s46 = sphi 0, %s46
      %s48 = sphi 0, %s46
      %s49 = sphi 0, %s48
      %s63 = sphi 0, %s49
      %s67 = sphi 0, %s67
      %s69 = sphi 0, %s67
      %s70 = sphi 0, %s69
      %s84 = sphi 0, %s70
      %s90 = sphi 0, %s92
      %s93 = sphi 0, %s90
      %s94 = sphi 0, %s93
      %s110 = sphi 0, %s94
      %s116 = sphi 0, %s118
      %s119 = sphi 0, %s116
      %s120 = sphi 0, %s119
      %s136 = sphi 0, %s120
      %s140 = sphi 0, %s140
      %s142 = sphi 0, %s140
      %s143 = sphi 0, %s142
      %s157 = sphi 0, %s143
    $region4: #{tpu_custom_call.1} parent=1 // loop_header_branch
      %15 = sbr.rel (%p13) target = $region8
    $region5: #{tpu_custom_call.1} parent=1 // loop_body
      %s17 = ssub.s32 %s12, 1
      %s18 = ssub.s32 %s12, 2
      %s19 = sadd.s32 %s12, 1
      %s20 = ssub.s32 %s12, %s19
      %p21 = scmp.eq.s32.totalorder %s20, 0
      %s23 = sadd.s32 %s22, 1
      %s24 = scalar_select %p21, %s22, %s23
      %p27 = pneg %p21
      %p28 = scmp.eq.s32.totalorder %s12, 2
      %p29 = por %p27, %p28
      %p30 = scmp.ne.s32.totalorder %s22, %s25
      %p31 = scmp.eq.s32.totalorder %s12, 0
      %p32 = por %p30, %p31
      %p33 = scmp.ne.s32.totalorder %s22, %s25
      %p34 = scmp.eq.s32.totalorder %s17, 2
      %p35 = por %p33, %p34
      %p36 = scmp.ne.s32.totalorder %s25, %s26
      %p37 = scmp.eq.s32.totalorder %s17, 0
      %p38 = por %p36, %p37
      %p39 = scmp.ne.s32.totalorder %s25, %s26
      %p40 = scmp.eq.s32.totalorder %s18, 2
      %p41 = por %p39, %p40
      %p43 = scmp.ne.s32.totalorder %s26, %s42
      %p44 = scmp.eq.s32.totalorder %s18, 0
      %p45 = por %p43, %p44
      %s47 = sadd.s32 %s46, 1
      %p50 = scmp.eq.s32.totalorder %s12, 2
      %p51 = scmp.ne.s32.totalorder %s46, %s48
      %p52 = scmp.eq.s32.totalorder %s12, 0
      %p53 = por %p51, %p52
      %p54 = scmp.ne.s32.totalorder %s46, %s48
      %p55 = scmp.eq.s32.totalorder %s17, 2
      %p56 = por %p54, %p55
      %p57 = scmp.ne.s32.totalorder %s48, %s49
      %p58 = scmp.eq.s32.totalorder %s17, 0
      %p59 = por %p57, %p58
      %p60 = scmp.ne.s32.totalorder %s48, %s49
      %p61 = scmp.eq.s32.totalorder %s18, 2
      %p62 = por %p60, %p61
      %p64 = scmp.ne.s32.totalorder %s49, %s63
      %p65 = scmp.eq.s32.totalorder %s18, 0
      %p66 = por %p64, %p65
      %s68 = sadd.s32 %s67, 1
      %p71 = scmp.eq.s32.totalorder %s12, 2
      %p72 = scmp.ne.s32.totalorder %s67, %s69
      %p73 = scmp.eq.s32.totalorder %s12, 0
      %p74 = por %p72, %p73
      %p75 = scmp.ne.s32.totalorder %s67, %s69
      %p76 = scmp.eq.s32.totalorder %s17, 2
      %p77 = por %p75, %p76
      %p78 = scmp.ne.s32.totalorder %s69, %s70
      %p79 = scmp.eq.s32.totalorder %s17, 0
      %p80 = por %p78, %p79
      %p81 = scmp.ne.s32.totalorder %s69, %s70
      %p82 = scmp.eq.s32.totalorder %s18, 2
      %p83 = por %p81, %p82
      %p85 = scmp.ne.s32.totalorder %s70, %s84
      %p86 = scmp.eq.s32.totalorder %s18, 0
      %p87 = por %p85, %p86
      %s88 = ssub.s32 %s12, %s19
      %p89 = scmp.eq.s32.totalorder %s88, 0
      %s91 = sadd.s32 %s90, 1
      %s92 = scalar_select %p89, %s90, %s91
      %p95 = pneg %p89
      %p96 = scmp.eq.s32.totalorder %s12, 2
      %p97 = por %p95, %p96
      %p98 = scmp.ne.s32.totalorder %s90, %s93
      %p99 = scmp.eq.s32.totalorder %s12, 0
      %p100 = por %p98, %p99
      %p101 = scmp.ne.s32.totalorder %s90, %s93
      %p102 = scmp.eq.s32.totalorder %s17, 2
      %p103 = por %p101, %p102
      %p104 = scmp.ne.s32.totalorder %s93, %s94
      %p105 = scmp.eq.s32.totalorder %s17, 0
      %p106 = por %p104, %p105
      %p107 = scmp.ne.s32.totalorder %s93, %s94
      %p108 = scmp.eq.s32.totalorder %s18, 2
      %p109 = por %p107, %p108
      %p111 = scmp.ne.s32.totalorder %s94, %s110
      %p112 = scmp.eq.s32.totalorder %s18, 0
      %p113 = por %p111, %p112
      %s114 = ssub.s32 %s12, %s19
      %p115 = scmp.eq.s32.totalorder %s114, 0
      %s117 = sadd.s32 %s116, 1
      %s118 = scalar_select %p115, %s116, %s117
      %p121 = pneg %p115
      %p122 = scmp.eq.s32.totalorder %s12, 2
      %p123 = por %p121, %p122
      %p124 = scmp.ne.s32.totalorder %s116, %s119
      %p125 = scmp.eq.s32.totalorder %s12, 0
      %p126 = por %p124, %p125
      %p127 = scmp.ne.s32.totalorder %s116, %s119
      %p128 = scmp.eq.s32.totalorder %s17, 2
      %p129 = por %p127, %p128
      %p130 = scmp.ne.s32.totalorder %s119, %s120
      %p131 = scmp.eq.s32.totalorder %s17, 0
      %p132 = por %p130, %p131
      %p133 = scmp.ne.s32.totalorder %s119, %s120
      %p134 = scmp.eq.s32.totalorder %s18, 2
      %p135 = por %p133, %p134
      %p137 = scmp.ne.s32.totalorder %s120, %s136
      %p138 = scmp.eq.s32.totalorder %s18, 0
      %p139 = por %p137, %p138
      %s141 = sadd.s32 %s140, 1
      %p144 = scmp.eq.s32.totalorder %s12, 2
      %p145 = scmp.ne.s32.totalorder %s140, %s142
      %p146 = scmp.eq.s32.totalorder %s12, 0
      %p147 = por %p145, %p146
      %p148 = scmp.ne.s32.totalorder %s140, %s142
      %p149 = scmp.eq.s32.totalorder %s17, 2
      %p150 = por %p148, %p149
      %p151 = scmp.ne.s32.totalorder %s142, %s143
      %p152 = scmp.eq.s32.totalorder %s17, 0
      %p153 = por %p151, %p152
      %p154 = scmp.ne.s32.totalorder %s142, %s143
      %p155 = scmp.eq.s32.totalorder %s18, 2
      %p156 = por %p154, %p155
      %p158 = scmp.ne.s32.totalorder %s143, %s157
      %p159 = scmp.eq.s32.totalorder %s18, 0
      %p160 = por %p158, %p159
      %p161 = scmp.le.s32.totalorder 1, %s12
      %p162 = scmp.lt.s32.totalorder %s12, 4
      %p163 = pnand %p161, %p162
      %p164 = pneg %p163
      // Predicated region
      $region9: #{tpu_custom_call.1} parent=5 // pred_check
        _
      $region10: #{tpu_custom_call.1} parent=5 // pred_check_branch
        %166 = sbr.rel (%p163) target = $region12
      $region11: #{tpu_custom_call.1} parent=5 // pred_region
        %s167 = ssub.s32 %s12, 1
        // Predicated region
        $region13: #{tpu_custom_call.1} parent=11 // pred_check
          %p168 = pneg %p59
        $region14: #{tpu_custom_call.1} parent=11 // pred_check_branch
          %170 = sbr.rel (%p168) target = $region16
        $region15: #{tpu_custom_call.1} parent=11 // pred_region
          _
        $region16: #{tpu_custom_call.1} parent=11 // pred_fallthru
          _
        // Predicated region
        $region17: #{tpu_custom_call.1} parent=11 // pred_check
          %p171 = pneg %p80
        $region18: #{tpu_custom_call.1} parent=11 // pred_check_branch
          %173 = sbr.rel (%p171) target = $region20
        $region19: #{tpu_custom_call.1} parent=11 // pred_region
          _
        $region20: #{tpu_custom_call.1} parent=11 // pred_fallthru
          _
      $region12: #{tpu_custom_call.1} parent=5 // pred_fallthru
        _
      %p174 = scmp.lt.s32.totalorder %s12, 3
      // Predicated region
      $region21: #{tpu_custom_call.1} parent=5 // pred_check
        %p175 = pneg %p174
      $region22: #{tpu_custom_call.1} parent=5 // pred_check_branch
        %177 = sbr.rel (%p175) target = $region24
      $region23: #{tpu_custom_call.1} parent=5 // pred_region
        // Predicated region
        $region25: #{tpu_custom_call.1} parent=23 // pred_check
          %p178 = pneg %p32
        $region26: #{tpu_custom_call.1} parent=23 // pred_check_branch
          %180 = sbr.rel (%p178) target = $region28
        $region27: #{tpu_custom_call.1} parent=23 // pred_region
          %p181 = scmp.lt.s32.totalorder %s12, 2
          %s182 = scalar_select %p181, %s12, 2
          %s183 = smul.addr %s182, 4
          %s184 = smul.addr %s183, 8
          %s185 = scalar_lea.vmem %s0, %s184
        $region28: #{tpu_custom_call.1} parent=23 // pred_fallthru
          _
        // Predicated region
        $region29: #{tpu_custom_call.1} parent=23 // pred_check
          %p186 = pneg %p100
        $region30: #{tpu_custom_call.1} parent=23 // pred_check_branch
          %188 = sbr.rel (%p186) target = $region32
        $region31: #{tpu_custom_call.1} parent=23 // pred_region
          %p189 = scmp.lt.s32.totalorder %s12, 2
          %s190 = scalar_select %p189, %s12, 2
          %s191 = smul.addr %s190, 16
          %s192 = smul.addr %s191, 8
          %s193 = scalar_lea.vmem %s3, %s192
        $region32: #{tpu_custom_call.1} parent=23 // pred_fallthru
          _
        // Predicated region
        $region33: #{tpu_custom_call.1} parent=23 // pred_check
          %p194 = pneg %p126
        $region34: #{tpu_custom_call.1} parent=23 // pred_check_branch
          %196 = sbr.rel (%p194) target = $region36
        $region35: #{tpu_custom_call.1} parent=23 // pred_region
          %p197 = scmp.lt.s32.totalorder %s12, 2
          %s198 = scalar_select %p197, %s12, 2
          %s199 = smul.addr %s198, 16
          %s200 = smul.addr %s199, 8
          %s201 = scalar_lea.vmem %s4, %s200
        $region36: #{tpu_custom_call.1} parent=23 // pred_fallthru
          _
      $region24: #{tpu_custom_call.1} parent=5 // pred_fallthru
        _
      %p202 = scmp.le.s32.totalorder 1, %s12
      %p203 = scmp.lt.s32.totalorder %s12, 4
      %p204 = pnand %p202, %p203
      %p205 = pneg %p204
      // Predicated region
      $region37: #{tpu_custom_call.1} parent=5 // pred_check
        _
      $region38: #{tpu_custom_call.1} parent=5 // pred_check_branch
        %207 = sbr.rel (%p204) target = $region40
      $region39: #{tpu_custom_call.1} parent=5 // pred_region
        %s208 = ssub.s32 %s12, 1
        %p209 = scmp.lt.s32.totalorder %s17, 2
        %s210 = scalar_select %p209, %s17, 2
        %s211 = smul.addr %s210, 4
        %s212 = smul.addr %s211, 8
        %s213 = scalar_lea.vmem %s0, %s212
        %p214 = pneg %p38
        %p215 = pneg %p35
        %p216 = pneg %p59
        %p217 = pneg %p56
        %p218 = pneg %p80
        %p219 = pneg %p77
        %p220 = scmp.lt.s32.totalorder %s17, 2
        %s221 = scalar_select %p220, %s17, 2
        %s222 = smul.addr %s221, 16
        %s223 = smul.addr %s222, 8
        %s224 = scalar_lea.vmem %s3, %s223
        %p225 = pneg %p106
        %p226 = pneg %p103
        %p227 = scmp.lt.s32.totalorder %s17, 2
        %s228 = scalar_select %p227, %s17, 2
        %s229 = smul.addr %s228, 16
        %s230 = smul.addr %s229, 8
        %s231 = scalar_lea.vmem %s4, %s230
        %p232 = pneg %p132
        %p233 = pneg %p129
        %p234 = pneg %p153
        %p235 = pneg %p150
        %p236 = scmp.lt.s32.totalorder %s17, 2
        %s237 = scalar_select %p236, %s17, 2
        %s238 = smul.addr %s237, 4
        %s239 = smul.addr %s238, 8
        %s240 = scalar_lea.vmem %s0, %s239
        %p241 = scmp.lt.s32.totalorder %s17, 2
        %s242 = scalar_select %p241, %s17, 2
        %s243 = smul.addr %s242, 16
        %s244 = smul.addr %s243, 8
        %s245 = scalar_lea.vmem %s3, %s244
        %p246 = scmp.lt.s32.totalorder %s17, 2
        %s247 = scalar_select %p246, %s17, 2
        %s248 = smul.addr %s247, 16
        %s249 = smul.addr %s248, 8
        %s250 = scalar_lea.vmem %s4, %s249
        %p252 = scmp.eq.s32.totalorder %s17, 0
        // Predicated region
        $region41: #{tpu_custom_call.1} parent=39 // pred_check
          %p253 = pneg %p252
        $region42: #{tpu_custom_call.1} parent=39 // pred_check_branch
          %255 = sbr.rel (%p253) target = $region44
        $region43: #{tpu_custom_call.1} parent=39 // pred_region
          %256 = vst [vmem:[#allocation2] sm:$0xff] 0.0
          %257 = vst [vmem:[#allocation2 + $0x8] sm:$0xff] 0.0
          %258 = vst [vmem:[#allocation2 + $0x10] sm:$0xff] 0.0
          %259 = vst [vmem:[#allocation2 + $0x18] sm:$0xff] 0.0
          %260 = vst [vmem:[#allocation2 + $0x20] sm:$0xff] 0.0
          %261 = vst [vmem:[#allocation2 + $0x28] sm:$0xff] 0.0
          %262 = vst [vmem:[#allocation2 + $0x30] sm:$0xff] 0.0
          %263 = vst [vmem:[#allocation2 + $0x38] sm:$0xff] 0.0
          %264 = vst [vmem:[#allocation2 + $0x40] sm:$0xff] 0.0
          %265 = vst [vmem:[#allocation2 + $0x48] sm:$0xff] 0.0
          %266 = vst [vmem:[#allocation2 + $0x50] sm:$0xff] 0.0
          %267 = vst [vmem:[#allocation2 + $0x58] sm:$0xff] 0.0
          %268 = vst [vmem:[#allocation2 + $0x60] sm:$0xff] 0.0
          %269 = vst [vmem:[#allocation2 + $0x68] sm:$0xff] 0.0
          %270 = vst [vmem:[#allocation2 + $0x70] sm:$0xff] 0.0
          %271 = vst [vmem:[#allocation2 + $0x78] sm:$0xff] 0.0
        $region44: #{tpu_custom_call.1} parent=39 // pred_fallthru
          _
        %v272 = vld [vmem:[%s240] sm:$0xff]
        %v273 = vld [vmem:[%s240 + $0x8] sm:$0xff]
        %v274 = vld [vmem:[%s240 + $0x10] sm:$0xff]
        %v275 = vld [vmem:[%s240 + $0x18] sm:$0xff]
        %v276 = vunpack.c.l.s8.bf16 %v272
        %v277 = vunpack.c.h.s8.bf16 %v272
        %v278 = vunpack.c.l.s8.bf16 %v273
        %v279 = vunpack.c.h.s8.bf16 %v273
        %v280 = vunpack.c.l.s8.bf16 %v274
        %v281 = vunpack.c.h.s8.bf16 %v274
        %v282 = vunpack.c.l.s8.bf16 %v275
        %v283 = vunpack.c.h.s8.bf16 %v275
        %v284 = vld [vmem:[%s1] sm:$0xf]
        %v285 = vld [vmem:[%s1 + $0x4] sm:$0xf]
        %v286 = vld [vmem:[%s1 + $0x8] sm:$0xf]
        %v287 = vld [vmem:[%s1 + $0xc] sm:$0xf]
        %v288 = vld [vmem:[%s1 + $0x10] sm:$0xf]
        %v289 = vld [vmem:[%s1 + $0x14] sm:$0xf]
        %v290 = vld [vmem:[%s1 + $0x18] sm:$0xf]
        %v291 = vld [vmem:[%s1 + $0x1c] sm:$0xf]
        %v292 = vld [vmem:[%s1 + $0x20] sm:$0xf]
        %v293 = vld [vmem:[%s1 + $0x24] sm:$0xf]
        %v294 = vld [vmem:[%s1 + $0x28] sm:$0xf]
        %v295 = vld [vmem:[%s1 + $0x2c] sm:$0xf]
        %v296 = vld [vmem:[%s1 + $0x30] sm:$0xf]
        %v297 = vld [vmem:[%s1 + $0x34] sm:$0xf]
        %v298 = vld [vmem:[%s1 + $0x38] sm:$0xf]
        %v299 = vld [vmem:[%s1 + $0x3c] sm:$0xf]
        %v316 = vunpack.c.l.b16 %v284
        %v317 = vunpack.c.l.b16 %v285
        %v318 = vunpack.c.l.b16 %v286
        %v319 = vunpack.c.l.b16 %v287
        %v320 = vunpack.c.l.b16 %v288
        %v321 = vunpack.c.l.b16 %v289
        %v322 = vunpack.c.l.b16 %v290
        %v323 = vunpack.c.l.b16 %v291
        %v324 = vunpack.c.l.b16 %v292
        %v325 = vunpack.c.l.b16 %v293
        %v326 = vunpack.c.l.b16 %v294
        %v327 = vunpack.c.l.b16 %v295
        %v328 = vunpack.c.l.b16 %v296
        %v329 = vunpack.c.l.b16 %v297
        %v330 = vunpack.c.l.b16 %v298
        %v331 = vunpack.c.l.b16 %v299
        %v332 = vpack.c.b16 %v317, %v316
        %v333 = vpack.c.b16 %v319, %v318
        %v334 = vpack.c.b16 %v321, %v320
        %v335 = vpack.c.b16 %v323, %v322
        %v336 = vpack.c.b16 %v325, %v324
        %v337 = vpack.c.b16 %v327, %v326
        %v338 = vpack.c.b16 %v329, %v328
        %v339 = vpack.c.b16 %v331, %v330
        %348 = vmatprep.subr.bf16.mxu0 0
        %349 = vmatpush1.bf16.msra.mxu0 %v339
        %350 = vmatprep.subr.bf16.mxu0 0
        %351 = vmatpush1.bf16.msra.mxu0 %v338
        %352 = vmatprep.subr.bf16.mxu0 0
        %353 = vmatpush1.bf16.msra.mxu0 %v337
        %354 = vmatprep.subr.bf16.mxu0 0
        %355 = vmatpush1.bf16.msra.mxu0 %v336
        %356 = vmatprep.subr.bf16.mxu0 0
        %357 = vmatpush1.bf16.msra.mxu0 %v335
        %358 = vmatprep.subr.bf16.mxu0 0
        %359 = vmatpush1.bf16.msra.mxu0 %v334
        %360 = vmatprep.subr.bf16.mxu0 0
        %361 = vmatpush1.bf16.msra.mxu0 %v333
        %362 = vmatprep.subr.bf16.mxu0 0
        %363 = vmatpush1.bf16.msra.mxu0 %v332
        %364 = vmatprep.subr.bf16.mxu0 0
        %365 = vmatpush2.bf16.msra.mxu0 0
        %366 = vmatprep.subr.bf16.mxu0 0
        %367 = vmatpush2.bf16.msra.mxu0 0
        %368 = vmatprep.subr.bf16.mxu0 0
        %369 = vmatpush2.bf16.msra.mxu0 0
        %370 = vmatprep.subr.bf16.mxu0 0
        %371 = vmatpush2.bf16.msra.mxu0 0
        %372 = vmatprep.subr.bf16.mxu0 0
        %373 = vmatpush2.bf16.msra.mxu0 0
        %374 = vmatprep.subr.bf16.mxu0 0
        %375 = vmatpush2.bf16.msra.mxu0 0
        %376 = vmatprep.subr.bf16.mxu0 0
        %377 = vmatpush2.bf16.msra.mxu0 0
        %378 = vmatprep.subr.bf16.mxu0 0
        %379 = vmatpush2.bf16.msra.mxu0 0
        %380 = vmatprep.mubr.bf16.mxu0 0
        %381 = vmatmul.mubr.bf16.gmra.mxu0 %v276
        %v382 = vpop.f32.mrf.mxu0
        %v383 = vadd.f32 0.0, %v382
        %v384 = vpop.f32.mrf.mxu0
        %v385 = vpop.f32.mrf.mxu0
        %v386 = vadd.f32 0.0, %v385
        %v387 = vpop.f32.mrf.mxu0
        %388 = vmatprep.mubr.bf16.mxu0 0
        %389 = vmatmul.mubr.bf16.gmra.mxu0 %v277
        %v390 = vpop.f32.mrf.mxu0
        %v391 = vadd.f32 0.0, %v390
        %v392 = vpop.f32.mrf.mxu0
        %v393 = vpop.f32.mrf.mxu0
        %v394 = vadd.f32 0.0, %v393
        %v395 = vpop.f32.mrf.mxu0
        %396 = vmatprep.mubr.bf16.mxu0 0
        %397 = vmatmul.mubr.bf16.gmra.mxu0 %v278
        %v398 = vpop.f32.mrf.mxu0
        %v399 = vadd.f32 0.0, %v398
        %v400 = vpop.f32.mrf.mxu0
        %v401 = vpop.f32.mrf.mxu0
        %v402 = vadd.f32 0.0, %v401
        %v403 = vpop.f32.mrf.mxu0
        %404 = vmatprep.mubr.bf16.mxu0 0
        %405 = vmatmul.mubr.bf16.gmra.mxu0 %v279
        %v406 = vpop.f32.mrf.mxu0
        %v407 = vadd.f32 0.0, %v406
        %v408 = vpop.f32.mrf.mxu0
        %v409 = vpop.f32.mrf.mxu0
        %v410 = vadd.f32 0.0, %v409
        %v411 = vpop.f32.mrf.mxu0
        %412 = vmatprep.mubr.bf16.mxu0 0
        %413 = vmatmul.mubr.bf16.gmra.mxu0 %v280
        %v414 = vpop.f32.mrf.mxu0
        %v415 = vadd.f32 0.0, %v414
        %v416 = vpop.f32.mrf.mxu0
        %v417 = vpop.f32.mrf.mxu0
        %v418 = vadd.f32 0.0, %v417
        %v419 = vpop.f32.mrf.mxu0
        %420 = vmatprep.mubr.bf16.mxu0 0
        %421 = vmatmul.mubr.bf16.gmra.mxu0 %v281
        %v422 = vpop.f32.mrf.mxu0
        %v423 = vadd.f32 0.0, %v422
        %v424 = vpop.f32.mrf.mxu0
        %v425 = vpop.f32.mrf.mxu0
        %v426 = vadd.f32 0.0, %v425
        %v427 = vpop.f32.mrf.mxu0
        %428 = vmatprep.mubr.bf16.mxu0 0
        %429 = vmatmul.mubr.bf16.gmra.mxu0 %v282
        %v430 = vpop.f32.mrf.mxu0
        %v431 = vadd.f32 0.0, %v430
        %v432 = vpop.f32.mrf.mxu0
        %v433 = vpop.f32.mrf.mxu0
        %v434 = vadd.f32 0.0, %v433
        %v435 = vpop.f32.mrf.mxu0
        %436 = vmatprep.mubr.bf16.mxu0 0
        %437 = vmatmul.mubr.bf16.gmra.mxu0 %v283
        %v438 = vpop.f32.mrf.mxu0
        %v439 = vadd.f32 0.0, %v438
        %v440 = vpop.f32.mrf.mxu0
        %v441 = vpop.f32.mrf.mxu0
        %v442 = vadd.f32 0.0, %v441
        %v443 = vpop.f32.mrf.mxu0
        %444 = vdwg.mxu0
        %v445 = vld [vmem:[%s245] sm:$0xff]
        %v446 = vld [vmem:[%s245 + $0x8] sm:$0xff]
        %v447 = vld [vmem:[%s245 + $0x10] sm:$0xff]
        %v448 = vld [vmem:[%s245 + $0x18] sm:$0xff]
        %v449 = vld [vmem:[%s245 + $0x20] sm:$0xff]
        %v450 = vld [vmem:[%s245 + $0x28] sm:$0xff]
        %v451 = vld [vmem:[%s245 + $0x30] sm:$0xff]
        %v452 = vld [vmem:[%s245 + $0x38] sm:$0xff]
        %v453 = vld [vmem:[%s245 + $0x40] sm:$0xff]
        %v454 = vld [vmem:[%s245 + $0x48] sm:$0xff]
        %v455 = vld [vmem:[%s245 + $0x50] sm:$0xff]
        %v456 = vld [vmem:[%s245 + $0x58] sm:$0xff]
        %v457 = vld [vmem:[%s245 + $0x60] sm:$0xff]
        %v458 = vld [vmem:[%s245 + $0x68] sm:$0xff]
        %v459 = vld [vmem:[%s245 + $0x70] sm:$0xff]
        %v460 = vld [vmem:[%s245 + $0x78] sm:$0xff]
        %462 = vset.pattern.permute.xlu0 0
        %463 = vperm.xlu0 %462, %v445
        %v464 = vpop.permute.xlu0 %463
        %467 = vset.pattern.permute.xlu0 0
        %468 = vperm.xlu0 %467, %v446
        %v469 = vpop.permute.xlu0 %468
        %472 = vset.pattern.permute.xlu0 0
        %473 = vperm.xlu0 %472, %v447
        %v474 = vpop.permute.xlu0 %473
        %477 = vset.pattern.permute.xlu0 0
        %478 = vperm.xlu0 %477, %v448
        %v479 = vpop.permute.xlu0 %478
        %482 = vset.pattern.permute.xlu0 0
        %483 = vperm.xlu0 %482, %v449
        %v484 = vpop.permute.xlu0 %483
        %487 = vset.pattern.permute.xlu0 0
        %488 = vperm.xlu0 %487, %v450
        %v489 = vpop.permute.xlu0 %488
        %492 = vset.pattern.permute.xlu0 0
        %493 = vperm.xlu0 %492, %v451
        %v494 = vpop.permute.xlu0 %493
        %497 = vset.pattern.permute.xlu0 0
        %498 = vperm.xlu0 %497, %v452
        %v499 = vpop.permute.xlu0 %498
        %502 = vset.pattern.permute.xlu0 0
        %503 = vperm.xlu0 %502, %v453
        %v504 = vpop.permute.xlu0 %503
        %507 = vset.pattern.permute.xlu0 0
        %508 = vperm.xlu0 %507, %v454
        %v509 = vpop.permute.xlu0 %508
        %512 = vset.pattern.permute.xlu0 0
        %513 = vperm.xlu0 %512, %v455
        %v514 = vpop.permute.xlu0 %513
        %517 = vset.pattern.permute.xlu0 0
        %518 = vperm.xlu0 %517, %v456
        %v519 = vpop.permute.xlu0 %518
        %522 = vset.pattern.permute.xlu0 0
        %523 = vperm.xlu0 %522, %v457
        %v524 = vpop.permute.xlu0 %523
        %527 = vset.pattern.permute.xlu0 0
        %528 = vperm.xlu0 %527, %v458
        %v529 = vpop.permute.xlu0 %528
        %532 = vset.pattern.permute.xlu0 0
        %533 = vperm.xlu0 %532, %v459
        %v534 = vpop.permute.xlu0 %533
        %537 = vset.pattern.permute.xlu0 0
        %538 = vperm.xlu0 %537, %v460
        %v539 = vpop.permute.xlu0 %538
        %v541 = vmul.f32 %v383, %v464
        %v542 = vmul.f32 %v386, %v469
        %v543 = vmul.f32 %v391, %v474
        %v544 = vmul.f32 %v394, %v479
        %v545 = vmul.f32 %v399, %v484
        %v546 = vmul.f32 %v402, %v489
        %v547 = vmul.f32 %v407, %v494
        %v548 = vmul.f32 %v410, %v499
        %v549 = vmul.f32 %v415, %v504
        %v550 = vmul.f32 %v418, %v509
        %v551 = vmul.f32 %v423, %v514
        %v552 = vmul.f32 %v426, %v519
        %v553 = vmul.f32 %v431, %v524
        %v554 = vmul.f32 %v434, %v529
        %v555 = vmul.f32 %v439, %v534
        %v556 = vmul.f32 %v442, %v539
        %v557 = vmax.f32 %v541, 0.0
        %v558 = vmax.f32 %v542, 0.0
        %v559 = vmax.f32 %v543, 0.0
        %v560 = vmax.f32 %v544, 0.0
        %v561 = vmax.f32 %v545, 0.0
        %v562 = vmax.f32 %v546, 0.0
        %v563 = vmax.f32 %v547, 0.0
        %v564 = vmax.f32 %v548, 0.0
        %v565 = vmax.f32 %v549, 0.0
        %v566 = vmax.f32 %v550, 0.0
        %v567 = vmax.f32 %v551, 0.0
        %v568 = vmax.f32 %v552, 0.0
        %v569 = vmax.f32 %v553, 0.0
        %v570 = vmax.f32 %v554, 0.0
        %v571 = vmax.f32 %v555, 0.0
        %v572 = vmax.f32 %v556, 0.0
        %v573 = vpack.c.bf16 %v558, %v557
        %v574 = vpack.c.bf16 %v560, %v559
        %v575 = vpack.c.bf16 %v562, %v561
        %v576 = vpack.c.bf16 %v564, %v563
        %v577 = vpack.c.bf16 %v566, %v565
        %v578 = vpack.c.bf16 %v568, %v567
        %v579 = vpack.c.bf16 %v570, %v569
        %v580 = vpack.c.bf16 %v572, %v571
        %v581 = vld [vmem:[#allocation2] sm:$0xff]
        %v582 = vld [vmem:[#allocation2 + $0x8] sm:$0xff]
        %v583 = vld [vmem:[#allocation2 + $0x10] sm:$0xff]
        %v584 = vld [vmem:[#allocation2 + $0x18] sm:$0xff]
        %v585 = vld [vmem:[#allocation2 + $0x20] sm:$0xff]
        %v586 = vld [vmem:[#allocation2 + $0x28] sm:$0xff]
        %v587 = vld [vmem:[#allocation2 + $0x30] sm:$0xff]
        %v588 = vld [vmem:[#allocation2 + $0x38] sm:$0xff]
        %v589 = vld [vmem:[#allocation2 + $0x40] sm:$0xff]
        %v590 = vld [vmem:[#allocation2 + $0x48] sm:$0xff]
        %v591 = vld [vmem:[#allocation2 + $0x50] sm:$0xff]
        %v592 = vld [vmem:[#allocation2 + $0x58] sm:$0xff]
        %v593 = vld [vmem:[#allocation2 + $0x60] sm:$0xff]
        %v594 = vld [vmem:[#allocation2 + $0x68] sm:$0xff]
        %v595 = vld [vmem:[#allocation2 + $0x70] sm:$0xff]
        %v596 = vld [vmem:[#allocation2 + $0x78] sm:$0xff]
        %v597 = vld [vmem:[%s250] sm:$0xff]
        %v598 = vld [vmem:[%s250 + $0x8] sm:$0xff]
        %v599 = vld [vmem:[%s250 + $0x10] sm:$0xff]
        %v600 = vld [vmem:[%s250 + $0x18] sm:$0xff]
        %v601 = vld [vmem:[%s250 + $0x20] sm:$0xff]
        %v602 = vld [vmem:[%s250 + $0x28] sm:$0xff]
        %v603 = vld [vmem:[%s250 + $0x30] sm:$0xff]
        %v604 = vld [vmem:[%s250 + $0x38] sm:$0xff]
        %v605 = vld [vmem:[%s250 + $0x40] sm:$0xff]
        %v606 = vld [vmem:[%s250 + $0x48] sm:$0xff]
        %v607 = vld [vmem:[%s250 + $0x50] sm:$0xff]
        %v608 = vld [vmem:[%s250 + $0x58] sm:$0xff]
        %v609 = vld [vmem:[%s250 + $0x60] sm:$0xff]
        %v610 = vld [vmem:[%s250 + $0x68] sm:$0xff]
        %v611 = vld [vmem:[%s250 + $0x70] sm:$0xff]
        %v612 = vld [vmem:[%s250 + $0x78] sm:$0xff]
        %613 = vmatprep.subr.bf16.mxu0 0
        %614 = vmatpush1.bf16.msra.mxu0 %v580
        %615 = vmatprep.subr.bf16.mxu0 0
        %616 = vmatpush1.bf16.msra.mxu0 %v579
        %617 = vmatprep.subr.bf16.mxu0 0
        %618 = vmatpush1.bf16.msra.mxu0 %v578
        %619 = vmatprep.subr.bf16.mxu0 0
        %620 = vmatpush1.bf16.msra.mxu0 %v577
        %621 = vmatprep.subr.bf16.mxu0 0
        %622 = vmatpush1.bf16.msra.mxu0 %v576
        %623 = vmatprep.subr.bf16.mxu0 0
        %624 = vmatpush1.bf16.msra.mxu0 %v575
        %625 = vmatprep.subr.bf16.mxu0 0
        %626 = vmatpush1.bf16.msra.mxu0 %v574
        %627 = vmatprep.subr.bf16.mxu0 0
        %628 = vmatpush1.bf16.msra.mxu0 %v573
        %629 = vmatprep.subr.bf16.mxu0 0
        %630 = vmatpush2.bf16.msra.mxu0 0
        %631 = vmatprep.subr.bf16.mxu0 0
        %632 = vmatpush2.bf16.msra.mxu0 0
        %633 = vmatprep.subr.bf16.mxu0 0
        %634 = vmatpush2.bf16.msra.mxu0 0
        %635 = vmatprep.subr.bf16.mxu0 0
        %636 = vmatpush2.bf16.msra.mxu0 0
        %637 = vmatprep.subr.bf16.mxu0 0
        %638 = vmatpush2.bf16.msra.mxu0 0
        %639 = vmatprep.subr.bf16.mxu0 0
        %640 = vmatpush2.bf16.msra.mxu0 0
        %641 = vmatprep.subr.bf16.mxu0 0
        %642 = vmatpush2.bf16.msra.mxu0 0
        %643 = vmatprep.subr.bf16.mxu0 0
        %644 = vmatpush2.bf16.msra.mxu0 0
        %645 = vmatprep.mubr.bf16.mxu0 0
        %646 = vmatmul.mubr.bf16.gmra.mxu0 %v276
        %v647 = vpop.f32.mrf.mxu0
        %v648 = vadd.f32 0.0, %v647
        %v649 = vpop.f32.mrf.mxu0
        %v650 = vpop.f32.mrf.mxu0
        %v651 = vadd.f32 0.0, %v650
        %v652 = vpop.f32.mrf.mxu0
        %653 = vmatprep.mubr.bf16.mxu0 0
        %654 = vmatmul.mubr.bf16.gmra.mxu0 %v277
        %v655 = vpop.f32.mrf.mxu0
        %v656 = vadd.f32 0.0, %v655
        %v657 = vpop.f32.mrf.mxu0
        %v658 = vpop.f32.mrf.mxu0
        %v659 = vadd.f32 0.0, %v658
        %v660 = vpop.f32.mrf.mxu0
        %661 = vmatprep.mubr.bf16.mxu0 0
        %662 = vmatmul.mubr.bf16.gmra.mxu0 %v278
        %v663 = vpop.f32.mrf.mxu0
        %v664 = vadd.f32 0.0, %v663
        %v665 = vpop.f32.mrf.mxu0
        %v666 = vpop.f32.mrf.mxu0
        %v667 = vadd.f32 0.0, %v666
        %v668 = vpop.f32.mrf.mxu0
        %669 = vmatprep.mubr.bf16.mxu0 0
        %670 = vmatmul.mubr.bf16.gmra.mxu0 %v279
        %v671 = vpop.f32.mrf.mxu0
        %v672 = vadd.f32 0.0, %v671
        %v673 = vpop.f32.mrf.mxu0
        %v674 = vpop.f32.mrf.mxu0
        %v675 = vadd.f32 0.0, %v674
        %v676 = vpop.f32.mrf.mxu0
        %677 = vmatprep.mubr.bf16.mxu0 0
        %678 = vmatmul.mubr.bf16.gmra.mxu0 %v280
        %v679 = vpop.f32.mrf.mxu0
        %v680 = vadd.f32 0.0, %v679
        %v681 = vpop.f32.mrf.mxu0
        %v682 = vpop.f32.mrf.mxu0
        %v683 = vadd.f32 0.0, %v682
        %v684 = vpop.f32.mrf.mxu0
        %685 = vmatprep.mubr.bf16.mxu0 0
        %686 = vmatmul.mubr.bf16.gmra.mxu0 %v281
        %v687 = vpop.f32.mrf.mxu0
        %v688 = vadd.f32 0.0, %v687
        %v689 = vpop.f32.mrf.mxu0
        %v690 = vpop.f32.mrf.mxu0
        %v691 = vadd.f32 0.0, %v690
        %v692 = vpop.f32.mrf.mxu0
        %693 = vmatprep.mubr.bf16.mxu0 0
        %694 = vmatmul.mubr.bf16.gmra.mxu0 %v282
        %v695 = vpop.f32.mrf.mxu0
        %v696 = vadd.f32 0.0, %v695
        %v697 = vpop.f32.mrf.mxu0
        %v698 = vpop.f32.mrf.mxu0
        %v699 = vadd.f32 0.0, %v698
        %v700 = vpop.f32.mrf.mxu0
        %701 = vmatprep.mubr.bf16.mxu0 0
        %702 = vmatmul.mubr.bf16.gmra.mxu0 %v283
        %v703 = vpop.f32.mrf.mxu0
        %v704 = vadd.f32 0.0, %v703
        %v705 = vpop.f32.mrf.mxu0
        %v706 = vpop.f32.mrf.mxu0
        %v707 = vadd.f32 0.0, %v706
        %v708 = vpop.f32.mrf.mxu0
        %709 = vdwg.mxu0
        %711 = vset.pattern.permute.xlu0 0
        %712 = vperm.xlu0 %711, %v597
        %v713 = vpop.permute.xlu0 %712
        %716 = vset.pattern.permute.xlu0 0
        %717 = vperm.xlu0 %716, %v598
        %v718 = vpop.permute.xlu0 %717
        %721 = vset.pattern.permute.xlu0 0
        %722 = vperm.xlu0 %721, %v599
        %v723 = vpop.permute.xlu0 %722
        %726 = vset.pattern.permute.xlu0 0
        %727 = vperm.xlu0 %726, %v600
        %v728 = vpop.permute.xlu0 %727
        %731 = vset.pattern.permute.xlu0 0
        %732 = vperm.xlu0 %731, %v601
        %v733 = vpop.permute.xlu0 %732
        %736 = vset.pattern.permute.xlu0 0
        %737 = vperm.xlu0 %736, %v602
        %v738 = vpop.permute.xlu0 %737
        %741 = vset.pattern.permute.xlu0 0
        %742 = vperm.xlu0 %741, %v603
        %v743 = vpop.permute.xlu0 %742
        %746 = vset.pattern.permute.xlu0 0
        %747 = vperm.xlu0 %746, %v604
        %v748 = vpop.permute.xlu0 %747
        %751 = vset.pattern.permute.xlu0 0
        %752 = vperm.xlu0 %751, %v605
        %v753 = vpop.permute.xlu0 %752
        %756 = vset.pattern.permute.xlu0 0
        %757 = vperm.xlu0 %756, %v606
        %v758 = vpop.permute.xlu0 %757
        %761 = vset.pattern.permute.xlu0 0
        %762 = vperm.xlu0 %761, %v607
        %v763 = vpop.permute.xlu0 %762
        %766 = vset.pattern.permute.xlu0 0
        %767 = vperm.xlu0 %766, %v608
        %v768 = vpop.permute.xlu0 %767
        %771 = vset.pattern.permute.xlu0 0
        %772 = vperm.xlu0 %771, %v609
        %v773 = vpop.permute.xlu0 %772
        %776 = vset.pattern.permute.xlu0 0
        %777 = vperm.xlu0 %776, %v610
        %v778 = vpop.permute.xlu0 %777
        %781 = vset.pattern.permute.xlu0 0
        %782 = vperm.xlu0 %781, %v611
        %v783 = vpop.permute.xlu0 %782
        %786 = vset.pattern.permute.xlu0 0
        %787 = vperm.xlu0 %786, %v612
        %v788 = vpop.permute.xlu0 %787
        %v790 = vmul.f32 %v713, %v648
        %v791 = vmul.f32 %v718, %v651
        %v792 = vmul.f32 %v723, %v656
        %v793 = vmul.f32 %v728, %v659
        %v794 = vmul.f32 %v733, %v664
        %v795 = vmul.f32 %v738, %v667
        %v796 = vmul.f32 %v743, %v672
        %v797 = vmul.f32 %v748, %v675
        %v798 = vmul.f32 %v753, %v680
        %v799 = vmul.f32 %v758, %v683
        %v800 = vmul.f32 %v763, %v688
        %v801 = vmul.f32 %v768, %v691
        %v802 = vmul.f32 %v773, %v696
        %v803 = vmul.f32 %v778, %v699
        %v804 = vmul.f32 %v783, %v704
        %v805 = vmul.f32 %v788, %v707
        %v806 = vadd.f32 %v581, %v790
        %v807 = vadd.f32 %v582, %v791
        %v808 = vadd.f32 %v583, %v792
        %v809 = vadd.f32 %v584, %v793
        %v810 = vadd.f32 %v585, %v794
        %v811 = vadd.f32 %v586, %v795
        %v812 = vadd.f32 %v587, %v796
        %v813 = vadd.f32 %v588, %v797
        %v814 = vadd.f32 %v589, %v798
        %v815 = vadd.f32 %v590, %v799
        %v816 = vadd.f32 %v591, %v800
        %v817 = vadd.f32 %v592, %v801
        %v818 = vadd.f32 %v593, %v802
        %v819 = vadd.f32 %v594, %v803
        %v820 = vadd.f32 %v595, %v804
        %v821 = vadd.f32 %v596, %v805
        %822 = vst [vmem:[#allocation2] sm:$0xff] %v806
        %823 = vst [vmem:[#allocation2 + $0x8] sm:$0xff] %v807
        %824 = vst [vmem:[#allocation2 + $0x10] sm:$0xff] %v808
        %825 = vst [vmem:[#allocation2 + $0x18] sm:$0xff] %v809
        %826 = vst [vmem:[#allocation2 + $0x20] sm:$0xff] %v810
        %827 = vst [vmem:[#allocation2 + $0x28] sm:$0xff] %v811
        %828 = vst [vmem:[#allocation2 + $0x30] sm:$0xff] %v812
        %829 = vst [vmem:[#allocation2 + $0x38] sm:$0xff] %v813
        %830 = vst [vmem:[#allocation2 + $0x40] sm:$0xff] %v814
        %831 = vst [vmem:[#allocation2 + $0x48] sm:$0xff] %v815
        %832 = vst [vmem:[#allocation2 + $0x50] sm:$0xff] %v816
        %833 = vst [vmem:[#allocation2 + $0x58] sm:$0xff] %v817
        %834 = vst [vmem:[#allocation2 + $0x60] sm:$0xff] %v818
        %835 = vst [vmem:[#allocation2 + $0x68] sm:$0xff] %v819
        %836 = vst [vmem:[#allocation2 + $0x70] sm:$0xff] %v820
        %837 = vst [vmem:[#allocation2 + $0x78] sm:$0xff] %v821
        %p838 = scmp.eq.s32.totalorder %s17, 2
        // Predicated region
        $region45: #{tpu_custom_call.1} parent=39 // pred_check
          %p839 = pneg %p838
        $region46: #{tpu_custom_call.1} parent=39 // pred_check_branch
          %841 = sbr.rel (%p839) target = $region48
        $region47: #{tpu_custom_call.1} parent=39 // pred_region
          %v842 = vld [vmem:[#allocation2] sm:$0xff]
          %v843 = vld [vmem:[#allocation2 + $0x8] sm:$0xff]
          %v844 = vld [vmem:[#allocation2 + $0x10] sm:$0xff]
          %v845 = vld [vmem:[#allocation2 + $0x18] sm:$0xff]
          %v846 = vld [vmem:[#allocation2 + $0x20] sm:$0xff]
          %v847 = vld [vmem:[#allocation2 + $0x28] sm:$0xff]
          %v848 = vld [vmem:[#allocation2 + $0x30] sm:$0xff]
          %v849 = vld [vmem:[#allocation2 + $0x38] sm:$0xff]
          %v850 = vld [vmem:[#allocation2 + $0x40] sm:$0xff]
          %v851 = vld [vmem:[#allocation2 + $0x48] sm:$0xff]
          %v852 = vld [vmem:[#allocation2 + $0x50] sm:$0xff]
          %v853 = vld [vmem:[#allocation2 + $0x58] sm:$0xff]
          %v854 = vld [vmem:[#allocation2 + $0x60] sm:$0xff]
          %v855 = vld [vmem:[#allocation2 + $0x68] sm:$0xff]
          %v856 = vld [vmem:[#allocation2 + $0x70] sm:$0xff]
          %v857 = vld [vmem:[#allocation2 + $0x78] sm:$0xff]
          %v858 = vpack.c.bf16 %v843, %v842
          %v859 = vpack.c.bf16 %v845, %v844
          %v860 = vpack.c.bf16 %v847, %v846
          %v861 = vpack.c.bf16 %v849, %v848
          %v862 = vpack.c.bf16 %v851, %v850
          %v863 = vpack.c.bf16 %v853, %v852
          %v864 = vpack.c.bf16 %v855, %v854
          %v865 = vpack.c.bf16 %v857, %v856
          %v866 = vld [vmem:[%s2] sm:$0xf]
          %v867 = vld [vmem:[%s2 + $0x4] sm:$0xf]
          %v868 = vld [vmem:[%s2 + $0x8] sm:$0xf]
          %v869 = vld [vmem:[%s2 + $0xc] sm:$0xf]
          %v870 = vld [vmem:[%s2 + $0x10] sm:$0xf]
          %v871 = vld [vmem:[%s2 + $0x14] sm:$0xf]
          %v872 = vld [vmem:[%s2 + $0x18] sm:$0xf]
          %v873 = vld [vmem:[%s2 + $0x1c] sm:$0xf]
          %v874 = vld [vmem:[%s2 + $0x20] sm:$0xf]
          %v875 = vld [vmem:[%s2 + $0x24] sm:$0xf]
          %v876 = vld [vmem:[%s2 + $0x28] sm:$0xf]
          %v877 = vld [vmem:[%s2 + $0x2c] sm:$0xf]
          %v878 = vld [vmem:[%s2 + $0x30] sm:$0xf]
          %v879 = vld [vmem:[%s2 + $0x34] sm:$0xf]
          %v880 = vld [vmem:[%s2 + $0x38] sm:$0xf]
          %v881 = vld [vmem:[%s2 + $0x3c] sm:$0xf]
          %v898 = vunpack.c.l.b16 %v866
          %v899 = vunpack.c.l.b16 %v867
          %v900 = vunpack.c.l.b16 %v868
          %v901 = vunpack.c.l.b16 %v869
          %v902 = vunpack.c.l.b16 %v870
          %v903 = vunpack.c.l.b16 %v871
          %v904 = vunpack.c.l.b16 %v872
          %v905 = vunpack.c.l.b16 %v873
          %v906 = vunpack.c.l.b16 %v874
          %v907 = vunpack.c.l.b16 %v875
          %v908 = vunpack.c.l.b16 %v876
          %v909 = vunpack.c.l.b16 %v877
          %v910 = vunpack.c.l.b16 %v878
          %v911 = vunpack.c.l.b16 %v879
          %v912 = vunpack.c.l.b16 %v880
          %v913 = vunpack.c.l.b16 %v881
          %v914 = vpack.c.b16 %v899, %v898
          %v915 = vpack.c.b16 %v901, %v900
          %v916 = vpack.c.b16 %v903, %v902
          %v917 = vpack.c.b16 %v905, %v904
          %v918 = vpack.c.b16 %v907, %v906
          %v919 = vpack.c.b16 %v909, %v908
          %v920 = vpack.c.b16 %v911, %v910
          %v921 = vpack.c.b16 %v913, %v912
          %930 = vmatprep.subr.bf16.mxu0 0
          %931 = vmatpush1.bf16.msra.mxu0 %v921
          %932 = vmatprep.subr.bf16.mxu0 0
          %933 = vmatpush1.bf16.msra.mxu0 %v920
          %934 = vmatprep.subr.bf16.mxu0 0
          %935 = vmatpush1.bf16.msra.mxu0 %v919
          %936 = vmatprep.subr.bf16.mxu0 0
          %937 = vmatpush1.bf16.msra.mxu0 %v918
          %938 = vmatprep.subr.bf16.mxu0 0
          %939 = vmatpush1.bf16.msra.mxu0 %v917
          %940 = vmatprep.subr.bf16.mxu0 0
          %941 = vmatpush1.bf16.msra.mxu0 %v916
          %942 = vmatprep.subr.bf16.mxu0 0
          %943 = vmatpush1.bf16.msra.mxu0 %v915
          %944 = vmatprep.subr.bf16.mxu0 0
          %945 = vmatpush1.bf16.msra.mxu0 %v914
          %946 = vmatprep.subr.bf16.mxu0 0
          %947 = vmatpush2.bf16.msra.mxu0 0
          %948 = vmatprep.subr.bf16.mxu0 0
          %949 = vmatpush2.bf16.msra.mxu0 0
          %950 = vmatprep.subr.bf16.mxu0 0
          %951 = vmatpush2.bf16.msra.mxu0 0
          %952 = vmatprep.subr.bf16.mxu0 0
          %953 = vmatpush2.bf16.msra.mxu0 0
          %954 = vmatprep.subr.bf16.mxu0 0
          %955 = vmatpush2.bf16.msra.mxu0 0
          %956 = vmatprep.subr.bf16.mxu0 0
          %957 = vmatpush2.bf16.msra.mxu0 0
          %958 = vmatprep.subr.bf16.mxu0 0
          %959 = vmatpush2.bf16.msra.mxu0 0
          %960 = vmatprep.subr.bf16.mxu0 0
          %961 = vmatpush2.bf16.msra.mxu0 0
          %962 = vmatprep.mubr.bf16.mxu0 0
          %963 = vmatmul.mubr.bf16.gmra.mxu0 %v858
          %v964 = vpop.f32.mrf.mxu0
          %v965 = vadd.f32 0.0, %v964
          %v966 = vpop.f32.mrf.mxu0
          %v967 = vpop.f32.mrf.mxu0
          %v968 = vadd.f32 0.0, %v967
          %v969 = vpop.f32.mrf.mxu0
          %970 = vmatprep.mubr.bf16.mxu0 0
          %971 = vmatmul.mubr.bf16.gmra.mxu0 %v859
          %v972 = vpop.f32.mrf.mxu0
          %v973 = vadd.f32 0.0, %v972
          %v974 = vpop.f32.mrf.mxu0
          %v975 = vpop.f32.mrf.mxu0
          %v976 = vadd.f32 0.0, %v975
          %v977 = vpop.f32.mrf.mxu0
          %978 = vmatprep.mubr.bf16.mxu0 0
          %979 = vmatmul.mubr.bf16.gmra.mxu0 %v860
          %v980 = vpop.f32.mrf.mxu0
          %v981 = vadd.f32 0.0, %v980
          %v982 = vpop.f32.mrf.mxu0
          %v983 = vpop.f32.mrf.mxu0
          %v984 = vadd.f32 0.0, %v983
          %v985 = vpop.f32.mrf.mxu0
          %986 = vmatprep.mubr.bf16.mxu0 0
          %987 = vmatmul.mubr.bf16.gmra.mxu0 %v861
          %v988 = vpop.f32.mrf.mxu0
          %v989 = vadd.f32 0.0, %v988
          %v990 = vpop.f32.mrf.mxu0
          %v991 = vpop.f32.mrf.mxu0
          %v992 = vadd.f32 0.0, %v991
          %v993 = vpop.f32.mrf.mxu0
          %994 = vmatprep.mubr.bf16.mxu0 0
          %995 = vmatmul.mubr.bf16.gmra.mxu0 %v862
          %v996 = vpop.f32.mrf.mxu0
          %v997 = vadd.f32 0.0, %v996
          %v998 = vpop.f32.mrf.mxu0
          %v999 = vpop.f32.mrf.mxu0
          %v1000 = vadd.f32 0.0, %v999
          %v1001 = vpop.f32.mrf.mxu0
          %1002 = vmatprep.mubr.bf16.mxu0 0
          %1003 = vmatmul.mubr.bf16.gmra.mxu0 %v863
          %v1004 = vpop.f32.mrf.mxu0
          %v1005 = vadd.f32 0.0, %v1004
          %v1006 = vpop.f32.mrf.mxu0
          %v1007 = vpop.f32.mrf.mxu0
          %v1008 = vadd.f32 0.0, %v1007
          %v1009 = vpop.f32.mrf.mxu0
          %1010 = vmatprep.mubr.bf16.mxu0 0
          %1011 = vmatmul.mubr.bf16.gmra.mxu0 %v864
          %v1012 = vpop.f32.mrf.mxu0
          %v1013 = vadd.f32 0.0, %v1012
          %v1014 = vpop.f32.mrf.mxu0
          %v1015 = vpop.f32.mrf.mxu0
          %v1016 = vadd.f32 0.0, %v1015
          %v1017 = vpop.f32.mrf.mxu0
          %1018 = vmatprep.mubr.bf16.mxu0 0
          %1019 = vmatmul.mubr.bf16.gmra.mxu0 %v865
          %v1020 = vpop.f32.mrf.mxu0
          %v1021 = vadd.f32 0.0, %v1020
          %v1022 = vpop.f32.mrf.mxu0
          %v1023 = vpop.f32.mrf.mxu0
          %v1024 = vadd.f32 0.0, %v1023
          %v1025 = vpop.f32.mrf.mxu0
          %1026 = vdwg.mxu0
          %1027 = vst [vmem:[#allocation3] sm:$0xff] %v965
          %1028 = vst [vmem:[#allocation3 + $0x8] sm:$0xff] %v968
          %1029 = vst [vmem:[#allocation3 + $0x10] sm:$0xff] %v973
          %1030 = vst [vmem:[#allocation3 + $0x18] sm:$0xff] %v976
          %1031 = vst [vmem:[#allocation3 + $0x20] sm:$0xff] %v981
          %1032 = vst [vmem:[#allocation3 + $0x28] sm:$0xff] %v984
          %1033 = vst [vmem:[#allocation3 + $0x30] sm:$0xff] %v989
          %1034 = vst [vmem:[#allocation3 + $0x38] sm:$0xff] %v992
          %1035 = vst [vmem:[#allocation3 + $0x40] sm:$0xff] %v997
          %1036 = vst [vmem:[#allocation3 + $0x48] sm:$0xff] %v1000
          %1037 = vst [vmem:[#allocation3 + $0x50] sm:$0xff] %v1005
          %1038 = vst [vmem:[#allocation3 + $0x58] sm:$0xff] %v1008
          %1039 = vst [vmem:[#allocation3 + $0x60] sm:$0xff] %v1013
          %1040 = vst [vmem:[#allocation3 + $0x68] sm:$0xff] %v1016
          %1041 = vst [vmem:[#allocation3 + $0x70] sm:$0xff] %v1021
          %1042 = vst [vmem:[#allocation3 + $0x78] sm:$0xff] %v1024
        $region48: #{tpu_custom_call.1} parent=39 // pred_fallthru
          _
        // Predicated region
        $region49: #{tpu_custom_call.1} parent=39 // pred_check
          %p1043 = pneg %p150
        $region50: #{tpu_custom_call.1} parent=39 // pred_check_branch
          %1045 = sbr.rel (%p1043) target = $region52
        $region51: #{tpu_custom_call.1} parent=39 // pred_region
          %s1047 = ssub.s32 2048, 2048
          %1048 = vsyncadd [#allocation4], %s1047
          %s1049 = sshll.u32 [#allocation3], 4
          %s1050 = int_to_ptr.vmem [resolvable:$true] %s1049
          %1055 = dma.vmem_to_hbm [thread:$0]  %s1050, 2048, %s5, [#allocation4], 128, 128, 8
        $region52: #{tpu_custom_call.1} parent=39 // pred_fallthru
          _
        // Predicated region
        $region53: #{tpu_custom_call.1} parent=39 // pred_check
          %p1056 = pneg %p150
        $region54: #{tpu_custom_call.1} parent=39 // pred_check_branch
          %1058 = sbr.rel (%p1056) target = $region56
        $region55: #{tpu_custom_call.1} parent=39 // pred_region
          %1059 = dma.done [#allocation4], 2048
        $region56: #{tpu_custom_call.1} parent=39 // pred_fallthru
          _
      $region40: #{tpu_custom_call.1} parent=5 // pred_fallthru
        _
      %p1060 = scmp.le.s32.totalorder 2, %s12
      // Predicated region
      $region57: #{tpu_custom_call.1} parent=5 // pred_check
        %p1061 = pneg %p1060
      $region58: #{tpu_custom_call.1} parent=5 // pred_check_branch
        %1063 = sbr.rel (%p1061) target = $region60
      $region59: #{tpu_custom_call.1} parent=5 // pred_region
        %s1064 = ssub.s32 %s12, 2
      $region60: #{tpu_custom_call.1} parent=5 // pred_fallthru
        _
    $region6: #{tpu_custom_call.1} parent=1 // loop_footer
      %s16 = sadd.s32 1, %s12
    $region7: #{tpu_custom_call.1} parent=1 // loop_footer_branch
      %11 = sbr.rel target = $region3
    $region8: #{tpu_custom_call.1} parent=1 // loop_exit
      _
    %1065 = vsyncpa [#allocation4], 1
    %s1066 = scalar_lea.sflag [#allocation4], 1
    %1067 = vsyncpa %s1066, 1

</llo_original>
